<compile_context>
chip_gen: v5e
topology: v5e:2x2
jax: 0.10.0
libtpu: 0.0.40
codegen_flags: <defaults>
</compile_context>

<pallas_src>
import math

import jax
import jax.numpy as jnp
import numpy as np
from jax import lax
from jax.experimental import pallas as pl
from jax.experimental.pallas import tpu as pltpu


def _round_up(x: int, m: int) -> int:
    return (x + m - 1) // m * m


def _make_kernel(num_heads, head_dim, S, S_pad, tq, compute_dtype, hoist_k):
    nhs = num_heads * S_pad

    # Lane-chunk size for the in-place exp/normalize passes.  nhs is always a
    # multiple of 128; 512-1024 lanes keeps vreg pressure bounded.
    if nhs % 1024 == 0 and nhs >= 2048:
        chunk = 1024
    elif nhs % 512 == 0:
        chunk = 512
    elif nhs % 256 == 0:
        chunk = 256
    else:
        chunk = 128
    n_chunks = nhs // chunk

    def kernel(q_ref, k_ref, wqT_ref, bq_ref, wk_ref, bk_ref, out_ref, *scratch):
        # q_ref : (1, tq, D)     k_ref : (1, D, S_pad)  (channels-major, free NCHW reshape)
        # wqT   : (D, hidden)  scaled   bq : (1, hidden) scaled
        # wk    : (hidden, D)           bk : (hidden, 1)
        # out   : (1, tq, num_heads * S_pad)

        def k_projection():
            # Key projection, produced pre-transposed for the attention matmul.
            kT = k_ref[0].astype(compute_dtype)                       # (D, S_pad)
            kp = jnp.dot(wk_ref[...].astype(compute_dtype), kT,
                         preferred_element_type=jnp.float32) + bk_ref[...]
            return kp.astype(compute_dtype)                           # (hidden, S_pad)

        if hoist_k:
            # Multiple Q tiles: compute kpT once per batch element (qi == 0)
            # into persistent VMEM scratch; qi axis is "arbitrary".
            kpT_ref = scratch[0]

            @pl.when(pl.program_id(1) == 0)
            def _():
                kpT_ref[...] = k_projection()

            def kpT_slice(h):
                return kpT_ref[h * head_dim:(h + 1) * head_dim, :]
        else:
            kpT = k_projection()

            def kpT_slice(h):
                return kpT[h * head_dim:(h + 1) * head_dim, :]

        # Query projection; normalize_fact already folded into wqT / bq.
        q = q_ref[0].astype(compute_dtype)                            # (tq, D)
        qp = (jnp.dot(q, wqT_ref[...].astype(compute_dtype),
                      preferred_element_type=jnp.float32)
              + bq_ref[...]).astype(compute_dtype)                    # (tq, hidden)

        # Per-head logits written head-major (== PyTorch flatten(2) order)
        # straight into the output slab; the joint-softmax row-max is folded
        # into this loop so the slab is not re-read for the max.
        run_max = jnp.full((tq, 1), -jnp.inf, dtype=jnp.float32)
        for h in range(num_heads):
            logits = jnp.dot(qp[:, h * head_dim:(h + 1) * head_dim], kpT_slice(h),
                             preferred_element_type=jnp.float32)      # (tq, S_pad) f32
            if S_pad != S:
                # Padded spatial lanes -> -inf so they vanish from the softmax.
                lane = lax.broadcasted_iota(jnp.int32, (tq, S_pad), 1)
                logits = jnp.where(lane < S, logits, -jnp.inf)
            out_ref[0, :, pl.ds(h * S_pad, S_pad)] = logits
            run_max = jnp.maximum(run_max, jnp.max(logits, axis=-1, keepdims=True))

        # Pass 1: in-place chunked exp(x - max), accumulating the denominator.
        # Statically unrolled -> every slice offset is compile-time & lane-aligned.
        denom = jnp.zeros((tq, 1), dtype=jnp.float32)
        for c in range(n_chunks):
            sl = pl.ds(c * chunk, chunk)
            e = jnp.exp(out_ref[0, :, sl] - run_max)
            out_ref[0, :, sl] = e
            denom = denom + jnp.sum(e, axis=-1, keepdims=True)

        # Exact reciprocal: softmax rows sum to 1 (approx=True was the source
        # of the previous tolerance failure).
        inv = pl.reciprocal(denom, approx=False)

        # Pass 2: in-place chunked normalization.
        for c in range(n_chunks):
            sl = pl.ds(c * chunk, chunk)
            out_ref[0, :, sl] = out_ref[0, :, sl] * inv

    return kernel


def mh_attention_map(q, k_nchw, wq, bq, wk, bk, num_heads,
                     *, matmul_dtype=jnp.float32):
    """q: (B, Q, D) f32, k_nchw: (B, D, H, W) f32. Returns (B, Q, num_heads, H, W) f32.

    matmul_dtype: operand dtype for the MXU matmuls (use jnp.bfloat16 on
    v6e/v7x). Accumulation and the softmax always stay f32.
    """
    # TODO(synk): optional `mask` path (masked_fill -inf before softmax) not implemented.
    B, Qn, D = q.shape
    _, C, H, W = k_nchw.shape
    assert C == D
    hidden = wq.shape[0]
    assert hidden % num_heads == 0
    head_dim = hidden // num_heads
    S = H * W
    normalize_fact = float(hidden / num_heads) ** (-0.5)

    # --- trace-time layout / padding prep (outside the grid loop) ----------
    # Lane-align the per-head spatial slab so every per-head store is
    # lane-dense (no masked vst).  Padded lanes get -inf logits in-kernel.
    S_pad = _round_up(S, 128)
    k_cs = k_nchw.reshape(B, C, S).astype(jnp.float32)   # free reshape of NCHW
    if S_pad != S:
        k_cs = jnp.pad(k_cs, ((0, 0), (0, 0), (0, S_pad - S)))

    # Q tiling: pad (never assert) to a multiple of the tile; tq is a multiple
    # of 8 so the BlockSpec sublane constraint holds for any Qn.
    tq = min(128, _round_up(Qn, 8))
    Q_pad = _round_up(Qn, tq)
    q_in = q.astype(jnp.float32)
    if Q_pad != Qn:
        q_in = jnp.pad(q_in, ((0, 0), (0, Q_pad - Qn), (0, 0)))
    n_qtiles = Q_pad // tq

    # Pre-transpose q weights and fold normalize_fact into weight AND bias
    # (PyTorch scales the biased projection: qh * normalize_fact).
    wqT = (wq.T * normalize_fact).astype(jnp.float32)                 # (D, hidden)
    bq2 = (bq * normalize_fact).reshape(1, hidden).astype(jnp.float32)
    bk2 = bk.reshape(hidden, 1).astype(jnp.float32)
    wk2 = wk.astype(jnp.float32)

    # Hoist the k projection into persistent VMEM scratch only when there are
    # multiple Q tiles (avoids recomputing wk @ kT per Q tile).  Otherwise keep
    # both grid axes "parallel" for megacore / v7x 2-TC sharding.
    hoist_k = n_qtiles > 1
    scratch_shapes = [pltpu.VMEM((hidden, S_pad), matmul_dtype)] if hoist_k else []
    dim_sem = ("parallel", "arbitrary") if hoist_k else ("parallel", "parallel")

    kernel = _make_kernel(num_heads, head_dim, S, S_pad, tq, matmul_dtype, hoist_k)

    out = pl.pallas_call(
        kernel,
        out_shape=jax.ShapeDtypeStruct((B, Q_pad, num_heads * S_pad), jnp.float32),
        grid_spec=pltpu.PrefetchScalarGridSpec(
            num_scalar_prefetch=0,
            grid=(B, n_qtiles),
            in_specs=[
                pl.BlockSpec((1, tq, D), lambda b, qi: (b, qi, 0)),        # q
                pl.BlockSpec((1, C, S_pad), lambda b, qi: (b, 0, 0)),      # k (B, C, S_pad)
                pl.BlockSpec((D, hidden), lambda b, qi: (0, 0)),           # wqT (scaled)
                pl.BlockSpec((1, hidden), lambda b, qi: (0, 0)),           # bq  (scaled)
                pl.BlockSpec((hidden, D), lambda b, qi: (0, 0)),           # wk
                pl.BlockSpec((hidden, 1), lambda b, qi: (0, 0)),           # bk
            ],
            out_specs=pl.BlockSpec((1, tq, num_heads * S_pad),
                                   lambda b, qi: (b, qi, 0)),
            scratch_shapes=scratch_shapes,
        ),
        compiler_params=pltpu.CompilerParams(
            dimension_semantics=dim_sem,
            vmem_limit_bytes=32 * 1024 * 1024,   # v7x-safe (64 MiB physical VMEM)
        ),
    )(q_in, k_cs, wqT, bq2, wk2, bk2)

    # Drop Q / spatial padding and restore (B, Q, num_heads, H, W).
    out = out.reshape(B, Q_pad, num_heads, S_pad)[:, :Qn, :, :S]
    return out.reshape(B, Qn, num_heads, H, W)


def _reference(q, k_nchw, wq, bq, wk, bk, num_heads):
    """Pure-JAX reference mirroring the PyTorch forward."""
    B, Qn, D = q.shape
    _, C, H, W = k_nchw.shape
    hidden = wq.shape[0]
    c = hidden // num_heads
    fact = float(hidden / num_heads) ** (-0.5)
    qp = q @ wq.T + bq                                                # (B, Q, hidden)
    kp = jnp.einsum("bchw,oc->bohw", k_nchw, wk) + bk[None, :, None, None]
    qh = qp.reshape(B, Qn, num_heads, c)
    kh = kp.reshape(B, num_heads, c, H, W)
    wts = jnp.einsum("bqnc,bnchw->bqnhw", qh * fact, kh)
    flat = wts.reshape(B, Qn, -1)
    flat = jax.nn.softmax(flat, axis=-1)
    return flat.reshape(B, Qn, num_heads, H, W)


if __name__ == "__main__":
    # Module config (DETR-ish, small)
    query_dim = 32
    hidden_dim = 32
    num_heads = 4
    B, Qn, H, W = 2, 8, 16, 16

    key = jax.random.PRNGKey(0)
    kq, kk, kqin, kkin = jax.random.split(key, 4)

    # xavier_uniform_ init for (hidden_dim, query_dim) weights, zero biases.
    bound = math.sqrt(6.0 / (query_dim + hidden_dim))
    wq = jax.random.uniform(kq, (hidden_dim, query_dim), jnp.float32, -bound, bound)
    wk = jax.random.uniform(kk, (hidden_dim, query_dim), jnp.float32, -bound, bound)
    bq = jnp.zeros((hidden_dim,), jnp.float32)
    bk = jnp.zeros((hidden_dim,), jnp.float32)

    # Inputs: q (B, Q, query_dim); k feature map NCHW (B, query_dim, H, W).
    q = jax.random.normal(kqin, (B, Qn, query_dim), jnp.float32)
    k_nchw = jax.random.normal(kkin, (B, query_dim, H, W), jnp.float32)

    ref = _reference(q, k_nchw, wq, bq, wk, bk, num_heads)

    # 1) f32 matmul path: faithful to the reference (exact softmax reciprocal).
    out = jax.block_until_ready(mh_attention_map(q, k_nchw, wq, bq, wk, bk, num_heads))
    assert out.shape == (B, Qn, num_heads, H, W)
    np.testing.assert_allclose(np.asarray(out), np.asarray(ref), rtol=5e-4, atol=1e-6)

    # 2) bf16 matmul-operand path (v6e/v7x MXU-friendly); softmax stays f32.
    out_bf = jax.block_until_ready(
        mh_attention_map(q, k_nchw, wq, bq, wk, bk, num_heads,
                         matmul_dtype=jnp.bfloat16))
    np.testing.assert_allclose(np.asarray(out_bf), np.asarray(ref), rtol=5e-2, atol=5e-3)
    row_sums = np.asarray(out_bf).reshape(B, Qn, -1).sum(-1)
    np.testing.assert_allclose(row_sums, 1.0, rtol=1e-3)

    # 3) Non-multiple Q (reviewer's robustness case): Q padding + multiple
    #    Q-tiles + hoisted k projection path.
    Qn2 = 200
    q2 = jax.random.normal(jax.random.PRNGKey(7), (B, Qn2, query_dim), jnp.float32)
    ref2 = _reference(q2, k_nchw, wq, bq, wk, bk, num_heads)
    out2 = jax.block_until_ready(mh_attention_map(q2, k_nchw, wq, bq, wk, bk, num_heads))
    assert out2.shape == (B, Qn2, num_heads, H, W)
    np.testing.assert_allclose(np.asarray(out2), np.asarray(ref2), rtol=5e-4, atol=1e-6)

    print("KERNEL_OK")
</pallas_src>

<mosaic_0001>
module attributes {stable_mosaic.version = 11 : i64} {
  func.func @kernel(%arg0: i32, %arg1: i32, %arg2: memref<1x8x32xf32, #tpu.memory_space<vmem>>, %arg3: memref<1x32x256xf32, #tpu.memory_space<vmem>>, %arg4: memref<32x32xf32, #tpu.memory_space<vmem>>, %arg5: memref<1x32xf32, #tpu.memory_space<vmem>>, %arg6: memref<32x32xf32, #tpu.memory_space<vmem>>, %arg7: memref<32x1xf32, #tpu.memory_space<vmem>>, %arg8: memref<1x8x1024xf32, #tpu.memory_space<vmem>>) attributes {dimension_semantics = [#tpu.dimension_semantics<parallel>, #tpu.dimension_semantics<parallel>], iteration_bounds = array<i64: 2, 1>, scalar_prefetch = 0 : i64, scratch_operands = 0 : i64, tpu.core_type = #tpu.core_type<tc>, window_params = [{transform_indices = @transform_0, window_bounds = array<i64: 1, 8, 32>}, {transform_indices = @transform_1, window_bounds = array<i64: 1, 32, 256>}, {pipeline_mode = #tpu.pipeline_mode<synchronous>, transform_indices = @transform_2, window_bounds = array<i64: 32, 32>}, {pipeline_mode = #tpu.pipeline_mode<synchronous>, transform_indices = @transform_3, window_bounds = array<i64: 1, 32>}, {pipeline_mode = #tpu.pipeline_mode<synchronous>, transform_indices = @transform_4, window_bounds = array<i64: 32, 32>}, {pipeline_mode = #tpu.pipeline_mode<synchronous>, transform_indices = @transform_5, window_bounds = array<i64: 32, 1>}, {transform_indices = @transform_6, window_bounds = array<i64: 1, 8, 1024>}]} {
    %c0 = arith.constant 0 : index
    %c0_0 = arith.constant 0 : index
    %c0_1 = arith.constant 0 : index
    %0 = vector.load %arg3[%c0, %c0_0, %c0_1] : memref<1x32x256xf32, #tpu.memory_space<vmem>>, vector<1x32x256xf32>
    %1 = vector.shape_cast %0 : vector<1x32x256xf32> to vector<32x256xf32>
    %c0_2 = arith.constant 0 : index
    %c0_3 = arith.constant 0 : index
    %2 = vector.load %arg6[%c0_2, %c0_3] : memref<32x32xf32, #tpu.memory_space<vmem>>, vector<32x32xf32>
    %cst = arith.constant dense<0.000000e+00> : vector<32x256xf32>
    %3 = tpu.matmul %2, %1, %cst {dimension_numbers = #tpu.dot_dimension_numbers<[1], [0], [0], [1], [0, 0, 1, 1], [], []>} : vector<32x32xf32>, vector<32x256xf32>, vector<32x256xf32> -> vector<32x256xf32>
    %c0_4 = arith.constant 0 : index
    %c0_5 = arith.constant 0 : index
    %4 = vector.load %arg7[%c0_4, %c0_5] : memref<32x1xf32, #tpu.memory_space<vmem>>, vector<32x1xf32>
    %5 = vector.broadcast %4 : vector<32x1xf32> to vector<32x256xf32>
    %6 = arith.addf %3, %5 : vector<32x256xf32>
    %c0_6 = arith.constant 0 : index
    %c0_7 = arith.constant 0 : index
    %c0_8 = arith.constant 0 : index
    %7 = vector.load %arg2[%c0_6, %c0_7, %c0_8] : memref<1x8x32xf32, #tpu.memory_space<vmem>>, vector<1x8x32xf32>
    %8 = vector.shape_cast %7 : vector<1x8x32xf32> to vector<8x32xf32>
    %c0_9 = arith.constant 0 : index
    %c0_10 = arith.constant 0 : index
    %9 = vector.load %arg4[%c0_9, %c0_10] : memref<32x32xf32, #tpu.memory_space<vmem>>, vector<32x32xf32>
    %cst_11 = arith.constant dense<0.000000e+00> : vector<8x32xf32>
    %10 = tpu.matmul %8, %9, %cst_11 {dimension_numbers = #tpu.dot_dimension_numbers<[1], [0], [0], [1], [0, 0, 1, 1], [], []>} : vector<8x32xf32>, vector<32x32xf32>, vector<8x32xf32> -> vector<8x32xf32>
    %c0_12 = arith.constant 0 : index
    %c0_13 = arith.constant 0 : index
    %11 = vector.load %arg5[%c0_12, %c0_13] : memref<1x32xf32, #tpu.memory_space<vmem>>, vector<1x32xf32>
    %12 = vector.broadcast %11 : vector<1x32xf32> to vector<8x32xf32>
    %13 = arith.addf %10, %12 : vector<8x32xf32>
    %cst_14 = arith.constant 0xFF800000 : f32
    %14 = vector.broadcast %cst_14 : f32 to vector<8x1xf32>
    %15 = vector.extract_strided_slice %13 {offsets = [0, 0], sizes = [8, 8], strides = [1, 1]} : vector<8x32xf32> to vector<8x8xf32>
    %16 = vector.extract_strided_slice %6 {offsets = [0, 0], sizes = [8, 256], strides = [1, 1]} : vector<32x256xf32> to vector<8x256xf32>
    %cst_15 = arith.constant dense<0.000000e+00> : vector<8x256xf32>
    %17 = tpu.matmul %15, %16, %cst_15 {dimension_numbers = #tpu.dot_dimension_numbers<[1], [0], [0], [1], [0, 0, 1, 1], [], []>} : vector<8x8xf32>, vector<8x256xf32>, vector<8x256xf32> -> vector<8x256xf32>
    %c0_16 = arith.constant 0 : index
    %c0_17 = arith.constant 0 : index
    %c0_18 = arith.constant 0 : index
    %18 = vector.load %arg8[%c0_16, %c0_17, %c0_18] : memref<1x8x1024xf32, #tpu.memory_space<vmem>>, vector<1x8x256xf32>
    %19 = vector.shape_cast %18 : vector<1x8x256xf32> to vector<8x256xf32>
    %20 = vector.shape_cast %17 : vector<8x256xf32> to vector<1x8x256xf32>
    tpu.vector_store %arg8[%c0_16, %c0_17, %c0_18], %20 {strides = array<i32>} : memref<1x8x1024xf32, #tpu.memory_space<vmem>>, vector<1x8x256xf32>,
    %cst_19 = arith.constant dense<0xFF800000> : vector<8xf32>
    %21 = vector.multi_reduction <maximumf>, %17, %cst_19 [1] : vector<8x256xf32> to vector<8xf32>
    %22 = vector.shape_cast %21 : vector<8xf32> to vector<8x1xf32>
    %23 = arith.maximumf %14, %22 : vector<8x1xf32>
    %24 = vector.extract_strided_slice %13 {offsets = [0, 8], sizes = [8, 8], strides = [1, 1]} : vector<8x32xf32> to vector<8x8xf32>
    %25 = vector.extract_strided_slice %6 {offsets = [8, 0], sizes = [8, 256], strides = [1, 1]} : vector<32x256xf32> to vector<8x256xf32>
    %cst_20 = arith.constant dense<0.000000e+00> : vector<8x256xf32>
    %26 = tpu.matmul %24, %25, %cst_20 {dimension_numbers = #tpu.dot_dimension_numbers<[1], [0], [0], [1], [0, 0, 1, 1], [], []>} : vector<8x8xf32>, vector<8x256xf32>, vector<8x256xf32> -> vector<8x256xf32>
    %c0_21 = arith.constant 0 : index
    %c0_22 = arith.constant 0 : index
    %c256 = arith.constant 256 : index
    %27 = vector.load %arg8[%c0_21, %c0_22, %c256] : memref<1x8x1024xf32, #tpu.memory_space<vmem>>, vector<1x8x256xf32>
    %28 = vector.shape_cast %27 : vector<1x8x256xf32> to vector<8x256xf32>
    %29 = vector.shape_cast %26 : vector<8x256xf32> to vector<1x8x256xf32>
    tpu.vector_store %arg8[%c0_21, %c0_22, %c256], %29 {strides = array<i32>} : memref<1x8x1024xf32, #tpu.memory_space<vmem>>, vector<1x8x256xf32>,
    %cst_23 = arith.constant dense<0xFF800000> : vector<8xf32>
    %30 = vector.multi_reduction <maximumf>, %26, %cst_23 [1] : vector<8x256xf32> to vector<8xf32>
    %31 = vector.shape_cast %30 : vector<8xf32> to vector<8x1xf32>
    %32 = arith.maximumf %23, %31 : vector<8x1xf32>
    %33 = vector.extract_strided_slice %13 {offsets = [0, 16], sizes = [8, 8], strides = [1, 1]} : vector<8x32xf32> to vector<8x8xf32>
    %34 = vector.extract_strided_slice %6 {offsets = [16, 0], sizes = [8, 256], strides = [1, 1]} : vector<32x256xf32> to vector<8x256xf32>
    %cst_24 = arith.constant dense<0.000000e+00> : vector<8x256xf32>
    %35 = tpu.matmul %33, %34, %cst_24 {dimension_numbers = #tpu.dot_dimension_numbers<[1], [0], [0], [1], [0, 0, 1, 1], [], []>} : vector<8x8xf32>, vector<8x256xf32>, vector<8x256xf32> -> vector<8x256xf32>
    %c0_25 = arith.constant 0 : index
    %c0_26 = arith.constant 0 : index
    %c512 = arith.constant 512 : index
    %36 = vector.load %arg8[%c0_25, %c0_26, %c512] : memref<1x8x1024xf32, #tpu.memory_space<vmem>>, vector<1x8x256xf32>
    %37 = vector.shape_cast %36 : vector<1x8x256xf32> to vector<8x256xf32>
    %38 = vector.shape_cast %35 : vector<8x256xf32> to vector<1x8x256xf32>
    tpu.vector_store %arg8[%c0_25, %c0_26, %c512], %38 {strides = array<i32>} : memref<1x8x1024xf32, #tpu.memory_space<vmem>>, vector<1x8x256xf32>,
    %cst_27 = arith.constant dense<0xFF800000> : vector<8xf32>
    %39 = vector.multi_reduction <maximumf>, %35, %cst_27 [1] : vector<8x256xf32> to vector<8xf32>
    %40 = vector.shape_cast %39 : vector<8xf32> to vector<8x1xf32>
    %41 = arith.maximumf %32, %40 : vector<8x1xf32>
    %42 = vector.extract_strided_slice %13 {offsets = [0, 24], sizes = [8, 8], strides = [1, 1]} : vector<8x32xf32> to vector<8x8xf32>
    %43 = vector.extract_strided_slice %6 {offsets = [24, 0], sizes = [8, 256], strides = [1, 1]} : vector<32x256xf32> to vector<8x256xf32>
    %cst_28 = arith.constant dense<0.000000e+00> : vector<8x256xf32>
    %44 = tpu.matmul %42, %43, %cst_28 {dimension_numbers = #tpu.dot_dimension_numbers<[1], [0], [0], [1], [0, 0, 1, 1], [], []>} : vector<8x8xf32>, vector<8x256xf32>, vector<8x256xf32> -> vector<8x256xf32>
    %c0_29 = arith.constant 0 : index
    %c0_30 = arith.constant 0 : index
    %c768 = arith.constant 768 : index
    %45 = vector.load %arg8[%c0_29, %c0_30, %c768] : memref<1x8x1024xf32, #tpu.memory_space<vmem>>, vector<1x8x256xf32>
    %46 = vector.shape_cast %45 : vector<1x8x256xf32> to vector<8x256xf32>
    %47 = vector.shape_cast %44 : vector<8x256xf32> to vector<1x8x256xf32>
    tpu.vector_store %arg8[%c0_29, %c0_30, %c768], %47 {strides = array<i32>} : memref<1x8x1024xf32, #tpu.memory_space<vmem>>, vector<1x8x256xf32>,
    %cst_31 = arith.constant dense<0xFF800000> : vector<8xf32>
    %48 = vector.multi_reduction <maximumf>, %44, %cst_31 [1] : vector<8x256xf32> to vector<8xf32>
    %49 = vector.shape_cast %48 : vector<8xf32> to vector<8x1xf32>
    %50 = arith.maximumf %41, %49 : vector<8x1xf32>
    %cst_32 = arith.constant 0.000000e+00 : f32
    %51 = vector.broadcast %cst_32 : f32 to vector<8x1xf32>
    %c0_33 = arith.constant 0 : index
    %c0_34 = arith.constant 0 : index
    %c0_35 = arith.constant 0 : index
    %52 = vector.load %arg8[%c0_33, %c0_34, %c0_35] : memref<1x8x1024xf32, #tpu.memory_space<vmem>>, vector<1x8x512xf32>
    %53 = vector.shape_cast %52 : vector<1x8x512xf32> to vector<8x512xf32>
    %54 = vector.broadcast %50 : vector<8x1xf32> to vector<8x512xf32>
    %55 = arith.subf %53, %54 : vector<8x512xf32>
    %56 = math.exp %55 : vector<8x512xf32>
    %c0_36 = arith.constant 0 : index
    %c0_37 = arith.constant 0 : index
    %c0_38 = arith.constant 0 : index
    %57 = vector.load %arg8[%c0_36, %c0_37, %c0_38] : memref<1x8x1024xf32, #tpu.memory_space<vmem>>, vector<1x8x512xf32>
    %58 = vector.shape_cast %57 : vector<1x8x512xf32> to vector<8x512xf32>
    %59 = vector.shape_cast %56 : vector<8x512xf32> to vector<1x8x512xf32>
    tpu.vector_store %arg8[%c0_36, %c0_37, %c0_38], %59 {strides = array<i32>} : memref<1x8x1024xf32, #tpu.memory_space<vmem>>, vector<1x8x512xf32>,
    %cst_39 = arith.constant dense<0.000000e+00> : vector<8xf32>
    %60 = vector.multi_reduction <add>, %56, %cst_39 [1] : vector<8x512xf32> to vector<8xf32>
    %61 = vector.shape_cast %60 : vector<8xf32> to vector<8x1xf32>
    %62 = arith.addf %51, %61 : vector<8x1xf32>
    %c0_40 = arith.constant 0 : index
    %c0_41 = arith.constant 0 : index
    %c512_42 = arith.constant 512 : index
    %63 = vector.load %arg8[%c0_40, %c0_41, %c512_42] : memref<1x8x1024xf32, #tpu.memory_space<vmem>>, vector<1x8x512xf32>
    %64 = vector.shape_cast %63 : vector<1x8x512xf32> to vector<8x512xf32>
    %65 = vector.broadcast %50 : vector<8x1xf32> to vector<8x512xf32>
    %66 = arith.subf %64, %65 : vector<8x512xf32>
    %67 = math.exp %66 : vector<8x512xf32>
    %c0_43 = arith.constant 0 : index
    %c0_44 = arith.constant 0 : index
    %c512_45 = arith.constant 512 : index
    %68 = vector.load %arg8[%c0_43, %c0_44, %c512_45] : memref<1x8x1024xf32, #tpu.memory_space<vmem>>, vector<1x8x512xf32>
    %69 = vector.shape_cast %68 : vector<1x8x512xf32> to vector<8x512xf32>
    %70 = vector.shape_cast %67 : vector<8x512xf32> to vector<1x8x512xf32>
    tpu.vector_store %arg8[%c0_43, %c0_44, %c512_45], %70 {strides = array<i32>} : memref<1x8x1024xf32, #tpu.memory_space<vmem>>, vector<1x8x512xf32>,
    %cst_46 = arith.constant dense<0.000000e+00> : vector<8xf32>
    %71 = vector.multi_reduction <add>, %67, %cst_46 [1] : vector<8x512xf32> to vector<8xf32>
    %72 = vector.shape_cast %71 : vector<8xf32> to vector<8x1xf32>
    %73 = arith.addf %62, %72 : vector<8x1xf32>
    %74 = tpu.reciprocal %73 : vector<8x1xf32> -> vector<8x1xf32>
    %c0_47 = arith.constant 0 : index
    %c0_48 = arith.constant 0 : index
    %c0_49 = arith.constant 0 : index
    %75 = vector.load %arg8[%c0_47, %c0_48, %c0_49] : memref<1x8x1024xf32, #tpu.memory_space<vmem>>, vector<1x8x512xf32>
    %76 = vector.shape_cast %75 : vector<1x8x512xf32> to vector<8x512xf32>
    %77 = vector.broadcast %74 : vector<8x1xf32> to vector<8x512xf32>
    %78 = arith.mulf %76, %77 : vector<8x512xf32>
    %c0_50 = arith.constant 0 : index
    %c0_51 = arith.constant 0 : index
    %c0_52 = arith.constant 0 : index
    %79 = vector.load %arg8[%c0_50, %c0_51, %c0_52] : memref<1x8x1024xf32, #tpu.memory_space<vmem>>, vector<1x8x512xf32>
    %80 = vector.shape_cast %79 : vector<1x8x512xf32> to vector<8x512xf32>
    %81 = vector.shape_cast %78 : vector<8x512xf32> to vector<1x8x512xf32>
    tpu.vector_store %arg8[%c0_50, %c0_51, %c0_52], %81 {strides = array<i32>} : memref<1x8x1024xf32, #tpu.memory_space<vmem>>, vector<1x8x512xf32>,
    %c0_53 = arith.constant 0 : index
    %c0_54 = arith.constant 0 : index
    %c512_55 = arith.constant 512 : index
    %82 = vector.load %arg8[%c0_53, %c0_54, %c512_55] : memref<1x8x1024xf32, #tpu.memory_space<vmem>>, vector<1x8x512xf32>
    %83 = vector.shape_cast %82 : vector<1x8x512xf32> to vector<8x512xf32>
    %84 = vector.broadcast %74 : vector<8x1xf32> to vector<8x512xf32>
    %85 = arith.mulf %83, %84 : vector<8x512xf32>
    %c0_56 = arith.constant 0 : index
    %c0_57 = arith.constant 0 : index
    %c512_58 = arith.constant 512 : index
    %86 = vector.load %arg8[%c0_56, %c0_57, %c512_58] : memref<1x8x1024xf32, #tpu.memory_space<vmem>>, vector<1x8x512xf32>
    %87 = vector.shape_cast %86 : vector<1x8x512xf32> to vector<8x512xf32>
    %88 = vector.shape_cast %85 : vector<8x512xf32> to vector<1x8x512xf32>
    tpu.vector_store %arg8[%c0_56, %c0_57, %c512_58], %88 {strides = array<i32>} : memref<1x8x1024xf32, #tpu.memory_space<vmem>>, vector<1x8x512xf32>,
    return
  }
  func.func @transform_0(%arg0: i32, %arg1: i32) -> (i32, i32, i32) {
    %c0_i32 = arith.constant 0 : i32
    %c0_i32_0 = arith.constant 0 : i32
    return %arg0, %arg1, %c0_i32 : i32, i32, i32
  }
  func.func @transform_1(%arg0: i32, %arg1: i32) -> (i32, i32, i32) {
    %c0_i32 = arith.constant 0 : i32
    %c0_i32_0 = arith.constant 0 : i32
    %c0_i32_1 = arith.constant 0 : i32
    return %arg0, %c0_i32, %c0_i32_0 : i32, i32, i32
  }
  func.func @transform_2(%arg0: i32, %arg1: i32) -> (i32, i32) {
    %c0_i32 = arith.constant 0 : i32
    %c0_i32_0 = arith.constant 0 : i32
    %c0_i32_1 = arith.constant 0 : i32
    return %c0_i32, %c0_i32_0 : i32, i32
  }
  func.func @transform_3(%arg0: i32, %arg1: i32) -> (i32, i32) {
    %c0_i32 = arith.constant 0 : i32
    %c0_i32_0 = arith.constant 0 : i32
    %c0_i32_1 = arith.constant 0 : i32
    return %c0_i32, %c0_i32_0 : i32, i32
  }
  func.func @transform_4(%arg0: i32, %arg1: i32) -> (i32, i32) {
    %c0_i32 = arith.constant 0 : i32
    %c0_i32_0 = arith.constant 0 : i32
    %c0_i32_1 = arith.constant 0 : i32
    return %c0_i32, %c0_i32_0 : i32, i32
  }
  func.func @transform_5(%arg0: i32, %arg1: i32) -> (i32, i32) {
    %c0_i32 = arith.constant 0 : i32
    %c0_i32_0 = arith.constant 0 : i32
    %c0_i32_1 = arith.constant 0 : i32
    return %c0_i32, %c0_i32_0 : i32, i32
  }
  func.func @transform_6(%arg0: i32, %arg1: i32) -> (i32, i32, i32) {
    %c0_i32 = arith.constant 0 : i32
    %c0_i32_0 = arith.constant 0 : i32
    return %arg0, %arg1, %c0_i32 : i32, i32, i32
  }
}

</mosaic_0001>

<llo_original>
// kernel: tpu_custom_call.1
$region0: #{tpu_custom_call.1}
  #allocation0 [shape = 'u32[]', space=smem, size = 0x4, offset = 0x4, fixed_abs, tag = 'smem constant byte address 0x4 - core index']
  #allocation1 [shape = 'u32[72,128]{1,0:T(1,128)}', space=vmem, size = 0x9000, scoped, tag = 'internal scratch']
  %s0 = inlined_call_operand.hbm [shape: f32[2,8,32], index: 0, kind: input, shape index: {}]
  %s1 = inlined_call_operand.hbm [shape: f32[2,32,256], index: 1, kind: input, shape index: {}]
  %s2 = inlined_call_operand.vmem [shape: f32[32,32], index: 2, kind: input, shape index: {}]
  %s3 = inlined_call_operand.vmem [shape: f32[1,32], index: 3, kind: input, shape index: {}]
  %s4 = inlined_call_operand.hbm [shape: f32[32,32], index: 4, kind: input, shape index: {}]
  %s5 = inlined_call_operand.vmem [shape: f32[32,1], index: 5, kind: input, shape index: {}]
  %s6 = inlined_call_operand.hbm [shape: f32[2,8,1024], index: 6, kind: output, shape index: {}]
  %s7 = sld [smem:[#allocation0]]
  $region69: #{tpu_custom_call.1} parent=0
    _
  %s9 = ssub.s32 1, %s7
  %s10 = scalar_select 0, %s9, %s7
  $region1: #{tpu_custom_call.1} parent=0
    #allocation2 [shape = 'u8[8192]{0}', space=vmem, size = 0x2000, scoped, tag = 'input window, operand 0']
    #allocation3 [shape = 's32[2]{0}', space=sflag, size = 0x8, scoped, tag = 'scoped memory for tpu_custom_call.1']
    #allocation4 [shape = 's32[2]{0}', space=sflag, size = 0x8, scoped, tag = 'scoped memory for tpu_custom_call.1']
    #allocation5 [shape = 'u8[65536]{0}', space=vmem, size = 0x10000, scoped, tag = 'input window, operand 1']
    #allocation6 [shape = 's32[2]{0}', space=sflag, size = 0x8, scoped, tag = 'scoped memory for tpu_custom_call.1']
    #allocation7 [shape = 'u8[16384]{0}', space=vmem, size = 0x4000, scoped, tag = 'input window, operand 4, single buffered']
    #allocation8 [shape = 'u8[65536]{0}', space=vmem, size = 0x10000, scoped, tag = 'output window, operand 0']
    %11 = vsyncpa [#allocation3], 0
    %s12 = scalar_lea.sflag [#allocation3], 1
    %13 = vsyncpa %s12, 0
    %14 = vsyncpa [#allocation6], 0
    %s15 = scalar_lea.sflag [#allocation6], 1
    %16 = vsyncpa %s15, 0
    %17 = vsyncpa [#allocation4], 0
    %s18 = scalar_lea.sflag [#allocation4], 1
    %19 = vsyncpa %s18, 0
    loop: start=0, step=1, limit=4
    $region2: #{tpu_custom_call.1} parent=1 // loop_pre_header
      _
    $region3: #{tpu_custom_call.1} parent=1 // loop_header
      %s21 = sphi 0, %s25
      %p22 = scmp.ge.s32.totalorder %s21, 4
      %s28 = sphi 0, %s40
      %s29 = sphi 0, %s36
      %s30 = sphi 0, %s28
      %s31 = sphi 0, %s29
      %s32 = sphi 0, %s30
      %s33 = sphi 0, %s31
      %s45 = sphi 0, %s47
      %s48 = sphi 0, %s45
      %s49 = sphi 0, %s48
      %s65 = sphi 0, %s49
      %s71 = sphi 0, %s73
      %s74 = sphi 0, %s71
      %s75 = sphi 0, %s74
      %s91 = sphi 0, %s75
      %s95 = sphi 0, %s95
      %s97 = sphi 0, %s95
      %s98 = sphi 0, %s97
      %s112 = sphi 0, %s98
      %s116 = sphi 0, %s116
      %s118 = sphi 0, %s116
      %s119 = sphi 0, %s118
      %s133 = sphi 0, %s119
      %s137 = sphi 0, %s137
      %s139 = sphi 0, %s137
      %s140 = sphi 0, %s139
      %s154 = sphi 0, %s140
      %s158 = sphi 0, %s158
      %s160 = sphi 0, %s158
      %s161 = sphi 0, %s160
      %s175 = sphi 0, %s161
      %s183 = sphi 0, %s185
      %s186 = sphi 0, %s183
      %s187 = sphi 0, %s186
      %s203 = sphi 0, %s187
    $region4: #{tpu_custom_call.1} parent=1 // loop_header_branch
      %24 = sbr.rel (%p22) target = $region8
    $region5: #{tpu_custom_call.1} parent=1 // loop_body
      %s26 = ssub.s32 %s21, 1
      %s27 = ssub.s32 %s21, 2
      %s34 = sadd.s32 1, %s29
      %p35 = scmp.ge.s32.totalorder %s34, 1
      %s36 = scalar_select %p35, 0, %s34
      %s37 = sadd.s32 1, %s28
      %s38 = scalar_select %p35, %s37, %s28
      %p39 = scmp.ge.s32.totalorder %s38, 2
      %s40 = scalar_select %p39, 0, %s38
      %s41 = ssub.s32 %s28, %s40
      %s42 = ssub.s32 %s29, %s36
      %s43 = sor.u32 %s41, %s42
      %p44 = scmp.eq.s32.totalorder %s43, 0
      %s46 = sadd.s32 %s45, 1
      %s47 = scalar_select %p44, %s45, %s46
      %p50 = pneg %p44
      %p51 = scmp.eq.s32.totalorder %s21, 1
      %p52 = por %p50, %p51
      %p53 = scmp.ne.s32.totalorder %s45, %s48
      %p54 = scmp.eq.s32.totalorder %s21, 0
      %p55 = por %p53, %p54
      %p56 = scmp.ne.s32.totalorder %s45, %s48
      %p57 = scmp.eq.s32.totalorder %s26, 1
      %p58 = por %p56, %p57
      %p59 = scmp.ne.s32.totalorder %s48, %s49
      %p60 = scmp.eq.s32.totalorder %s26, 0
      %p61 = por %p59, %p60
      %p62 = scmp.ne.s32.totalorder %s48, %s49
      %p63 = scmp.eq.s32.totalorder %s27, 1
      %p64 = por %p62, %p63
      %p66 = scmp.ne.s32.totalorder %s49, %s65
      %p67 = scmp.eq.s32.totalorder %s27, 0
      %p68 = por %p66, %p67
      %s69 = ssub.s32 %s28, %s40
      %p70 = scmp.eq.s32.totalorder %s69, 0
      %s72 = sadd.s32 %s71, 1
      %s73 = scalar_select %p70, %s71, %s72
      %p76 = pneg %p70
      %p77 = scmp.eq.s32.totalorder %s21, 1
      %p78 = por %p76, %p77
      %p79 = scmp.ne.s32.totalorder %s71, %s74
      %p80 = scmp.eq.s32.totalorder %s21, 0
      %p81 = por %p79, %p80
      %p82 = scmp.ne.s32.totalorder %s71, %s74
      %p83 = scmp.eq.s32.totalorder %s26, 1
      %p84 = por %p82, %p83
      %p85 = scmp.ne.s32.totalorder %s74, %s75
      %p86 = scmp.eq.s32.totalorder %s26, 0
      %p87 = por %p85, %p86
      %p88 = scmp.ne.s32.totalorder %s74, %s75
      %p89 = scmp.eq.s32.totalorder %s27, 1
      %p90 = por %p88, %p89
      %p92 = scmp.ne.s32.totalorder %s75, %s91
      %p93 = scmp.eq.s32.totalorder %s27, 0
      %p94 = por %p92, %p93
      %s96 = sadd.s32 %s95, 1
      %p99 = scmp.eq.s32.totalorder %s21, 1
      %p100 = scmp.ne.s32.totalorder %s95, %s97
      %p101 = scmp.eq.s32.totalorder %s21, 0
      %p102 = por %p100, %p101
      %p103 = scmp.ne.s32.totalorder %s95, %s97
      %p104 = scmp.eq.s32.totalorder %s26, 1
      %p105 = por %p103, %p104
      %p106 = scmp.ne.s32.totalorder %s97, %s98
      %p107 = scmp.eq.s32.totalorder %s26, 0
      %p108 = por %p106, %p107
      %p109 = scmp.ne.s32.totalorder %s97, %s98
      %p110 = scmp.eq.s32.totalorder %s27, 1
      %p111 = por %p109, %p110
      %p113 = scmp.ne.s32.totalorder %s98, %s112
      %p114 = scmp.eq.s32.totalorder %s27, 0
      %p115 = por %p113, %p114
      %s117 = sadd.s32 %s116, 1
      %p120 = scmp.eq.s32.totalorder %s21, 1
      %p121 = scmp.ne.s32.totalorder %s116, %s118
      %p122 = scmp.eq.s32.totalorder %s21, 0
      %p123 = por %p121, %p122
      %p124 = scmp.ne.s32.totalorder %s116, %s118
      %p125 = scmp.eq.s32.totalorder %s26, 1
      %p126 = por %p124, %p125
      %p127 = scmp.ne.s32.totalorder %s118, %s119
      %p128 = scmp.eq.s32.totalorder %s26, 0
      %p129 = por %p127, %p128
      %p130 = scmp.ne.s32.totalorder %s118, %s119
      %p131 = scmp.eq.s32.totalorder %s27, 1
      %p132 = por %p130, %p131
      %p134 = scmp.ne.s32.totalorder %s119, %s133
      %p135 = scmp.eq.s32.totalorder %s27, 0
      %p136 = por %p134, %p135
      %s138 = sadd.s32 %s137, 1
      %p141 = scmp.eq.s32.totalorder %s21, 1
      %p142 = scmp.ne.s32.totalorder %s137, %s139
      %p143 = scmp.eq.s32.totalorder %s21, 0
      %p144 = por %p142, %p143
      %p145 = scmp.ne.s32.totalorder %s137, %s139
      %p146 = scmp.eq.s32.totalorder %s26, 1
      %p147 = por %p145, %p146
      %p148 = scmp.ne.s32.totalorder %s139, %s140
      %p149 = scmp.eq.s32.totalorder %s26, 0
      %p150 = por %p148, %p149
      %p151 = scmp.ne.s32.totalorder %s139, %s140
      %p152 = scmp.eq.s32.totalorder %s27, 1
      %p153 = por %p151, %p152
      %p155 = scmp.ne.s32.totalorder %s140, %s154
      %p156 = scmp.eq.s32.totalorder %s27, 0
      %p157 = por %p155, %p156
      %s159 = sadd.s32 %s158, 1
      %p162 = scmp.eq.s32.totalorder %s21, 1
      %p163 = scmp.ne.s32.totalorder %s158, %s160
      %p164 = scmp.eq.s32.totalorder %s21, 0
      %p165 = por %p163, %p164
      %p166 = scmp.ne.s32.totalorder %s158, %s160
      %p167 = scmp.eq.s32.totalorder %s26, 1
      %p168 = por %p166, %p167
      %p169 = scmp.ne.s32.totalorder %s160, %s161
      %p170 = scmp.eq.s32.totalorder %s26, 0
      %p171 = por %p169, %p170
      %p172 = scmp.ne.s32.totalorder %s160, %s161
      %p173 = scmp.eq.s32.totalorder %s27, 1
      %p174 = por %p172, %p173
      %p176 = scmp.ne.s32.totalorder %s161, %s175
      %p177 = scmp.eq.s32.totalorder %s27, 0
      %p178 = por %p176, %p177
      %s179 = ssub.s32 %s28, %s40
      %s180 = ssub.s32 %s29, %s36
      %s181 = sor.u32 %s179, %s180
      %p182 = scmp.eq.s32.totalorder %s181, 0
      %s184 = sadd.s32 %s183, 1
      %s185 = scalar_select %p182, %s183, %s184
      %p188 = pneg %p182
      %p189 = scmp.eq.s32.totalorder %s21, 1
      %p190 = por %p188, %p189
      %p191 = scmp.ne.s32.totalorder %s183, %s186
      %p192 = scmp.eq.s32.totalorder %s21, 0
      %p193 = por %p191, %p192
      %p194 = scmp.ne.s32.totalorder %s183, %s186
      %p195 = scmp.eq.s32.totalorder %s26, 1
      %p196 = por %p194, %p195
      %p197 = scmp.ne.s32.totalorder %s186, %s187
      %p198 = scmp.eq.s32.totalorder %s26, 0
      %p199 = por %p197, %p198
      %p200 = scmp.ne.s32.totalorder %s186, %s187
      %p201 = scmp.eq.s32.totalorder %s27, 1
      %p202 = por %p200, %p201
      %p204 = scmp.ne.s32.totalorder %s187, %s203
      %p205 = scmp.eq.s32.totalorder %s27, 0
      %p206 = por %p204, %p205
      %p207 = scmp.le.s32.totalorder 1, %s21
      %p208 = scmp.lt.s32.totalorder %s21, 3
      %p209 = pnand %p207, %p208
      %p210 = pneg %p209
      // Predicated region
      $region9: #{tpu_custom_call.1} parent=5 // pred_check
        _
      $region10: #{tpu_custom_call.1} parent=5 // pred_check_branch
        %212 = sbr.rel (%p209) target = $region12
      $region11: #{tpu_custom_call.1} parent=5 // pred_region
        %s213 = ssub.s32 %s21, 1
        // Predicated region
        $region13: #{tpu_custom_call.1} parent=11 // pred_check
          %p214 = pneg %p108
        $region14: #{tpu_custom_call.1} parent=11 // pred_check_branch
          %216 = sbr.rel (%p214) target = $region16
        $region15: #{tpu_custom_call.1} parent=11 // pred_region
          _
        $region16: #{tpu_custom_call.1} parent=11 // pred_fallthru
          _
        // Predicated region
        $region17: #{tpu_custom_call.1} parent=11 // pred_check
          %p217 = pneg %p129
        $region18: #{tpu_custom_call.1} parent=11 // pred_check_branch
          %219 = sbr.rel (%p217) target = $region20
        $region19: #{tpu_custom_call.1} parent=11 // pred_region
          _
        $region20: #{tpu_custom_call.1} parent=11 // pred_fallthru
          _
        // Predicated region
        $region21: #{tpu_custom_call.1} parent=11 // pred_check
          %p220 = pneg %p150
        $region22: #{tpu_custom_call.1} parent=11 // pred_check_branch
          %222 = sbr.rel (%p220) target = $region24
        $region23: #{tpu_custom_call.1} parent=11 // pred_region
          %224 = vsyncadd [#allocation6], 0
          %s225 = sshll.u32 %s4, 4
          %s226 = int_to_ptr.hbm [resolvable:$true] %s225
          %s227 = sshll.u32 [#allocation7], 4
          %s228 = int_to_ptr.vmem [resolvable:$true] %s227
          %233 = dma.hbm_to_vmem [thread:$0]  %s226, 512, %s228, [#allocation6], 128, 128, 8
        $region24: #{tpu_custom_call.1} parent=11 // pred_fallthru
          _
        // Predicated region
        $region25: #{tpu_custom_call.1} parent=11 // pred_check
          %p234 = pneg %p171
        $region26: #{tpu_custom_call.1} parent=11 // pred_check_branch
          %236 = sbr.rel (%p234) target = $region28
        $region27: #{tpu_custom_call.1} parent=11 // pred_region
          _
        $region28: #{tpu_custom_call.1} parent=11 // pred_fallthru
          _
      $region12: #{tpu_custom_call.1} parent=5 // pred_fallthru
        _
      %p237 = scmp.lt.s32.totalorder %s21, 2
      // Predicated region
      $region29: #{tpu_custom_call.1} parent=5 // pred_check
        %p238 = pneg %p237
      $region30: #{tpu_custom_call.1} parent=5 // pred_check_branch
        %240 = sbr.rel (%p238) target = $region32
      $region31: #{tpu_custom_call.1} parent=5 // pred_region
        // Predicated region
        $region33: #{tpu_custom_call.1} parent=31 // pred_check
          %p241 = pneg %p55
        $region34: #{tpu_custom_call.1} parent=31 // pred_check_branch
          %243 = sbr.rel (%p241) target = $region36
        $region35: #{tpu_custom_call.1} parent=31 // pred_region
          %s244 = sand.u32 %s45, 1
          %s245 = scalar_lea.sflag [#allocation3], %s244
          %s246 = sand.u32 %s45, 1
          %s247 = smul.addr %s246, 8
          %s248 = scalar_lea.vmem [#allocation2], %s247
          %250 = vsyncadd %s245, 0
          %s251 = sadd.s32 %s29, %s28
          %s252 = smul.addr %s251, 8
          %s253 = scalar_lea.hbm %s0, %s252
          %s255 = sshll.u32 %s253, 4
          %s256 = int_to_ptr.hbm [resolvable:$true] %s255
          %s257 = sshll.u32 %s248, 4
          %s258 = int_to_ptr.vmem [resolvable:$true] %s257
          %260 = dma.hbm_to_vmem [thread:$0]  %s256, 128, %s258, %s245
        $region36: #{tpu_custom_call.1} parent=31 // pred_fallthru
          _
        // Predicated region
        $region37: #{tpu_custom_call.1} parent=31 // pred_check
          %p261 = pneg %p81
        $region38: #{tpu_custom_call.1} parent=31 // pred_check_branch
          %263 = sbr.rel (%p261) target = $region40
        $region39: #{tpu_custom_call.1} parent=31 // pred_region
          %s264 = sand.u32 %s21, 1
          %s265 = scalar_lea.sflag [#allocation6], %s264
          %s266 = sand.u32 %s71, 1
          %s267 = smul.addr %s266, 64
          %s268 = scalar_lea.vmem [#allocation5], %s267
          %270 = vsyncadd %s265, 0
          %s271 = smul.addr %s28, 8
          %s272 = smul.addr %s271, 8
          %s273 = scalar_lea.hbm %s1, %s272
          %s274 = sshll.u32 %s273, 4
          %s275 = int_to_ptr.hbm [resolvable:$true] %s274
          %s276 = sshll.u32 %s268, 4
          %s277 = int_to_ptr.vmem [resolvable:$true] %s276
          %282 = dma.hbm_to_vmem [thread:$0]  %s275, 1024, %s277, %s265, 256, 256, 16
        $region40: #{tpu_custom_call.1} parent=31 // pred_fallthru
          _
      $region32: #{tpu_custom_call.1} parent=5 // pred_fallthru
        _
      %p283 = scmp.le.s32.totalorder 1, %s21
      %p284 = scmp.lt.s32.totalorder %s21, 3
      %p285 = pnand %p283, %p284
      %p286 = pneg %p285
      // Predicated region
      $region41: #{tpu_custom_call.1} parent=5 // pred_check
        _
      $region42: #{tpu_custom_call.1} parent=5 // pred_check_branch
        %288 = sbr.rel (%p285) target = $region44
      $region43: #{tpu_custom_call.1} parent=5 // pred_region
        %s289 = ssub.s32 %s21, 1
        %s290 = sand.u32 %s48, 1
        %s291 = scalar_lea.sflag [#allocation3], %s290
        %s292 = sand.u32 %s48, 1
        %s293 = smul.addr %s292, 8
        %s294 = scalar_lea.vmem [#allocation2], %s293
        // Predicated region
        $region45: #{tpu_custom_call.1} parent=43 // pred_check
          %p295 = pneg %p61
        $region46: #{tpu_custom_call.1} parent=43 // pred_check_branch
          %297 = sbr.rel (%p295) target = $region48
        $region47: #{tpu_custom_call.1} parent=43 // pred_region
          %299 = dma.done %s291, 128
        $region48: #{tpu_custom_call.1} parent=43 // pred_fallthru
          _
        %s300 = sand.u32 %s26, 1
        %s301 = scalar_lea.sflag [#allocation6], %s300
        %s302 = sand.u32 %s74, 1
        %s303 = smul.addr %s302, 64
        %s304 = scalar_lea.vmem [#allocation5], %s303
        // Predicated region
        $region49: #{tpu_custom_call.1} parent=43 // pred_check
          %p305 = pneg %p87
        $region50: #{tpu_custom_call.1} parent=43 // pred_check_branch
          %307 = sbr.rel (%p305) target = $region52
        $region51: #{tpu_custom_call.1} parent=43 // pred_region
          %309 = dma.done %s301, 1024
        $region52: #{tpu_custom_call.1} parent=43 // pred_fallthru
          _
        // Predicated region
        $region53: #{tpu_custom_call.1} parent=43 // pred_check
          %p310 = pneg %p150
        $region54: #{tpu_custom_call.1} parent=43 // pred_check_branch
          %312 = sbr.rel (%p310) target = $region56
        $region55: #{tpu_custom_call.1} parent=43 // pred_region
          %314 = dma.done [#allocation6], 512
        $region56: #{tpu_custom_call.1} parent=43 // pred_fallthru
          _
        %s315 = sand.u32 %s48, 1
        %s316 = scalar_lea.sflag [#allocation3], %s315
        %s317 = sand.u32 %s48, 1
        %s318 = smul.addr %s317, 8
        %s319 = scalar_lea.vmem [#allocation2], %s318
        %p320 = pneg %p61
        %p321 = pneg %p58
        %s322 = sand.u32 %s26, 1
        %s323 = scalar_lea.sflag [#allocation6], %s322
        %s324 = sand.u32 %s74, 1
        %s325 = smul.addr %s324, 64
        %s326 = scalar_lea.vmem [#allocation5], %s325
        %p327 = pneg %p87
        %p328 = pneg %p84
        %p329 = pneg %p108
        %p330 = pneg %p105
        %p331 = pneg %p129
        %p332 = pneg %p126
        %p333 = pneg %p150
        %p334 = pneg %p147
        %p335 = pneg %p171
        %p336 = pneg %p168
        %p337 = pneg %p199
        %p338 = pneg %p196
        %s339 = sand.u32 %s186, 1
        %s340 = scalar_lea.sflag [#allocation4], %s339
        %s341 = sand.u32 %s186, 1
        %s342 = smul.addr %s341, 64
        %s343 = scalar_lea.vmem [#allocation8], %s342
        %v344 = vld [vmem:[%s304] sm:$0xff]
        %v345 = vld [vmem:[%s304 + $0x8] sm:$0xff]
        %v346 = vld [vmem:[%s304 + $0x10] sm:$0xff]
        %v347 = vld [vmem:[%s304 + $0x18] sm:$0xff]
        %v348 = vld [vmem:[%s304 + $0x20] sm:$0xff]
        %v349 = vld [vmem:[%s304 + $0x28] sm:$0xff]
        %v350 = vld [vmem:[%s304 + $0x30] sm:$0xff]
        %v351 = vld [vmem:[%s304 + $0x38] sm:$0xff]
        %v352 = vld [vmem:[#allocation7] sm:$0xff]
        %v353 = vld [vmem:[#allocation7 + $0x8] sm:$0xff]
        %v354 = vld [vmem:[#allocation7 + $0x10] sm:$0xff]
        %v355 = vld [vmem:[#allocation7 + $0x18] sm:$0xff]
        %v356 = vld [vmem:[%s5] sm:$0xff]
        %v357 = vld [vmem:[%s5 + $0x8] sm:$0xff]
        %v358 = vld [vmem:[%s5 + $0x10] sm:$0xff]
        %v359 = vld [vmem:[%s5 + $0x18] sm:$0xff]
        %361 = vset.pattern.permute.xlu0 0
        %362 = vperm.xlu0 %361, %v356
        %v363 = vpop.permute.xlu0 %362
        %366 = vset.pattern.permute.xlu0 0
        %367 = vperm.xlu0 %366, %v357
        %v368 = vpop.permute.xlu0 %367
        %371 = vset.pattern.permute.xlu0 0
        %372 = vperm.xlu0 %371, %v358
        %v373 = vpop.permute.xlu0 %372
        %376 = vset.pattern.permute.xlu0 0
        %377 = vperm.xlu0 %376, %v359
        %v378 = vpop.permute.xlu0 %377
        %vm380 = vcmask 261120
        %v382 = vsel %vm380, %v352, 0
        %v385 = vsel %vm380, %v353, 0
        %v388 = vsel %vm380, %v354, 0
        %v391 = vsel %vm380, %v355, 0
        %393 = vmatpush.msra.mxu0 0.0
        %394 = vmatpush.msra.mxu0 0.0
        %395 = vmatpush.msra.mxu0 0.0
        %396 = vmatpush.msra.mxu0 0.0
        %397 = vmatpush.msra.mxu0 0.0
        %398 = vmatpush.msra.mxu0 0.0
        %399 = vmatpush.msra.mxu0 0.0
        %400 = vmatpush.msra.mxu0 0.0
        %401 = vmatpush.msra.mxu0 0.0
        %402 = vmatpush.msra.mxu0 0.0
        %403 = vmatpush.msra.mxu0 0.0
        %404 = vmatpush.msra.mxu0 0.0
        %405 = vmatpush.msra.mxu0 %v350
        %406 = vmatpush.msra.mxu0 %v348
        %407 = vmatpush.msra.mxu0 %v346
        %408 = vmatpush.msra.mxu0 %v344
        %409 = vmatmul.f32.gmra.mxu0 %v382
        %v410 = vpop.f32.mrf.mxu0
        %v411 = vadd.f32 %v363, %v410
        %412 = vmatmul.f32.gmra.mxu0 %v385
        %v413 = vpop.f32.mrf.mxu0
        %v414 = vadd.f32 %v368, %v413
        %415 = vmatmul.f32.gmra.mxu0 %v388
        %v416 = vpop.f32.mrf.mxu0
        %v417 = vadd.f32 %v373, %v416
        %418 = vmatmul.f32.gmra.mxu0 %v391
        %v419 = vpop.f32.mrf.mxu0
        %v420 = vadd.f32 %v378, %v419
        %421 = vdwg.mxu0
        %422 = vmatpush.msra.mxu0 0.0
        %423 = vmatpush.msra.mxu0 0.0
        %424 = vmatpush.msra.mxu0 0.0
        %425 = vmatpush.msra.mxu0 0.0
        %426 = vmatpush.msra.mxu0 0.0
        %427 = vmatpush.msra.mxu0 0.0
        %428 = vmatpush.msra.mxu0 0.0
        %429 = vmatpush.msra.mxu0 0.0
        %430 = vmatpush.msra.mxu0 0.0
        %431 = vmatpush.msra.mxu0 0.0
        %432 = vmatpush.msra.mxu0 0.0
        %433 = vmatpush.msra.mxu0 0.0
        %434 = vmatpush.msra.mxu0 %v351
        %435 = vmatpush.msra.mxu0 %v349
        %436 = vmatpush.msra.mxu0 %v347
        %437 = vmatpush.msra.mxu0 %v345
        %438 = vmatmul.f32.gmra.mxu0 %v382
        %v439 = vpop.f32.mrf.mxu0
        %v440 = vadd.f32 %v363, %v439
        %441 = vmatmul.f32.gmra.mxu0 %v385
        %v442 = vpop.f32.mrf.mxu0
        %v443 = vadd.f32 %v368, %v442
        %444 = vmatmul.f32.gmra.mxu0 %v388
        %v445 = vpop.f32.mrf.mxu0
        %v446 = vadd.f32 %v373, %v445
        %447 = vmatmul.f32.gmra.mxu0 %v391
        %v448 = vpop.f32.mrf.mxu0
        %v449 = vadd.f32 %v378, %v448
        %450 = vdwg.mxu0
        %v451 = vld [vmem:[%s294] sm:$0xff]
        %v452 = vld [vmem:[%s2] sm:$0xff]
        %v453 = vld [vmem:[%s2 + $0x8] sm:$0xff]
        %v454 = vld [vmem:[%s2 + $0x10] sm:$0xff]
        %v455 = vld [vmem:[%s2 + $0x18] sm:$0xff]
        %v456 = vld [vmem:[%s3] sm:$0x1]
        %v458 = vperm.slane %v456, 0
        %v461 = vsel %vm380, %v451, 0
        %463 = vmatpush.msra.mxu0 0.0
        %464 = vmatpush.msra.mxu0 0.0
        %465 = vmatpush.msra.mxu0 0.0
        %466 = vmatpush.msra.mxu0 0.0
        %467 = vmatpush.msra.mxu0 0.0
        %468 = vmatpush.msra.mxu0 0.0
        %469 = vmatpush.msra.mxu0 0.0
        %470 = vmatpush.msra.mxu0 0.0
        %471 = vmatpush.msra.mxu0 0.0
        %472 = vmatpush.msra.mxu0 0.0
        %473 = vmatpush.msra.mxu0 0.0
        %474 = vmatpush.msra.mxu0 0.0
        %475 = vmatpush.msra.mxu0 %v455
        %476 = vmatpush.msra.mxu0 %v454
        %477 = vmatpush.msra.mxu0 %v453
        %478 = vmatpush.msra.mxu0 %v452
        %479 = vmatmul.f32.gmra.mxu0 %v461
        %v480 = vpop.f32.mrf.mxu0
        %v481 = vadd.f32 %v458, %v480
        %482 = vdwg.mxu0
        %vm483 = vcmask 64512
        %v485 = vsel %vm483, %v481, 0
        %487 = vmatpush.msra.mxu0 0.0
        %488 = vmatpush.msra.mxu0 0.0
        %489 = vmatpush.msra.mxu0 0.0
        %490 = vmatpush.msra.mxu0 0.0
        %491 = vmatpush.msra.mxu0 0.0
        %492 = vmatpush.msra.mxu0 0.0
        %493 = vmatpush.msra.mxu0 0.0
        %494 = vmatpush.msra.mxu0 0.0
        %495 = vmatpush.msra.mxu0 0.0
        %496 = vmatpush.msra.mxu0 0.0
        %497 = vmatpush.msra.mxu0 0.0
        %498 = vmatpush.msra.mxu0 0.0
        %499 = vmatpush.msra.mxu0 0.0
        %500 = vmatpush.msra.mxu0 0.0
        %501 = vmatpush.msra.mxu0 0.0
        %502 = vmatpush.msra.mxu0 %v411
        %503 = vmatmul.f32.gmra.mxu0 %v485
        %v504 = vpop.f32.mrf.mxu0
        %v505 = vadd.f32 0.0, %v504
        %506 = vdwg.mxu0
        %507 = vmatpush.msra.mxu0 0.0
        %508 = vmatpush.msra.mxu0 0.0
        %509 = vmatpush.msra.mxu0 0.0
        %510 = vmatpush.msra.mxu0 0.0
        %511 = vmatpush.msra.mxu0 0.0
        %512 = vmatpush.msra.mxu0 0.0
        %513 = vmatpush.msra.mxu0 0.0
        %514 = vmatpush.msra.mxu0 0.0
        %515 = vmatpush.msra.mxu0 0.0
        %516 = vmatpush.msra.mxu0 0.0
        %517 = vmatpush.msra.mxu0 0.0
        %518 = vmatpush.msra.mxu0 0.0
        %519 = vmatpush.msra.mxu0 0.0
        %520 = vmatpush.msra.mxu0 0.0
        %521 = vmatpush.msra.mxu0 0.0
        %522 = vmatpush.msra.mxu0 %v440
        %523 = vmatmul.f32.gmra.mxu0 %v485
        %v524 = vpop.f32.mrf.mxu0
        %v525 = vadd.f32 0.0, %v524
        %526 = vdwg.mxu0
        %527 = vst [vmem:[%s343] sm:$0xff] %v505
        %528 = vst [vmem:[%s343 + $0x8] sm:$0xff] %v525
        %v529 = vmax.f32 %v505, %v525
        %530 = vmax.xlane.f32.xlu0 %v529
        %v531 = vpop.xlane.xlu0 %530
        %532 = vrot.lane.b32.xlu0 %v481, 120
        %v533 = vpop.permute.xlu0 %532
        %v534 = vsel %vm483, %v533, 0
        %536 = vmatpush.msra.mxu0 0.0
        %537 = vmatpush.msra.mxu0 0.0
        %538 = vmatpush.msra.mxu0 0.0
        %539 = vmatpush.msra.mxu0 0.0
        %540 = vmatpush.msra.mxu0 0.0
        %541 = vmatpush.msra.mxu0 0.0
        %542 = vmatpush.msra.mxu0 0.0
        %543 = vmatpush.msra.mxu0 0.0
        %544 = vmatpush.msra.mxu0 0.0
        %545 = vmatpush.msra.mxu0 0.0
        %546 = vmatpush.msra.mxu0 0.0
        %547 = vmatpush.msra.mxu0 0.0
        %548 = vmatpush.msra.mxu0 0.0
        %549 = vmatpush.msra.mxu0 0.0
        %550 = vmatpush.msra.mxu0 0.0
        %551 = vmatpush.msra.mxu0 %v414
        %552 = vmatmul.f32.gmra.mxu0 %v534
        %v553 = vpop.f32.mrf.mxu0
        %v554 = vadd.f32 0.0, %v553
        %555 = vdwg.mxu0
        %556 = vmatpush.msra.mxu0 0.0
        %557 = vmatpush.msra.mxu0 0.0
        %558 = vmatpush.msra.mxu0 0.0
        %559 = vmatpush.msra.mxu0 0.0
        %560 = vmatpush.msra.mxu0 0.0
        %561 = vmatpush.msra.mxu0 0.0
        %562 = vmatpush.msra.mxu0 0.0
        %563 = vmatpush.msra.mxu0 0.0
        %564 = vmatpush.msra.mxu0 0.0
        %565 = vmatpush.msra.mxu0 0.0
        %566 = vmatpush.msra.mxu0 0.0
        %567 = vmatpush.msra.mxu0 0.0
        %568 = vmatpush.msra.mxu0 0.0
        %569 = vmatpush.msra.mxu0 0.0
        %570 = vmatpush.msra.mxu0 0.0
        %571 = vmatpush.msra.mxu0 %v443
        %572 = vmatmul.f32.gmra.mxu0 %v534
        %v573 = vpop.f32.mrf.mxu0
        %v574 = vadd.f32 0.0, %v573
        %575 = vdwg.mxu0
        %576 = vst [vmem:[%s343 + $0x10] sm:$0xff] %v554
        %577 = vst [vmem:[%s343 + $0x18] sm:$0xff] %v574
        %v578 = vmax.f32 %v554, %v574
        %579 = vmax.xlane.f32.xlu0 %v578
        %v580 = vpop.xlane.xlu0 %579
        %v581 = vmax.f32 %v531, %v580
        %582 = vrot.lane.b32.xlu0 %v481, 112
        %v583 = vpop.permute.xlu0 %582
        %v584 = vsel %vm483, %v583, 0
        %586 = vmatpush.msra.mxu0 0.0
        %587 = vmatpush.msra.mxu0 0.0
        %588 = vmatpush.msra.mxu0 0.0
        %589 = vmatpush.msra.mxu0 0.0
        %590 = vmatpush.msra.mxu0 0.0
        %591 = vmatpush.msra.mxu0 0.0
        %592 = vmatpush.msra.mxu0 0.0
        %593 = vmatpush.msra.mxu0 0.0
        %594 = vmatpush.msra.mxu0 0.0
        %595 = vmatpush.msra.mxu0 0.0
        %596 = vmatpush.msra.mxu0 0.0
        %597 = vmatpush.msra.mxu0 0.0
        %598 = vmatpush.msra.mxu0 0.0
        %599 = vmatpush.msra.mxu0 0.0
        %600 = vmatpush.msra.mxu0 0.0
        %601 = vmatpush.msra.mxu0 %v417
        %602 = vmatmul.f32.gmra.mxu0 %v584
        %v603 = vpop.f32.mrf.mxu0
        %v604 = vadd.f32 0.0, %v603
        %605 = vdwg.mxu0
        %606 = vmatpush.msra.mxu0 0.0
        %607 = vmatpush.msra.mxu0 0.0
        %608 = vmatpush.msra.mxu0 0.0
        %609 = vmatpush.msra.mxu0 0.0
        %610 = vmatpush.msra.mxu0 0.0
        %611 = vmatpush.msra.mxu0 0.0
        %612 = vmatpush.msra.mxu0 0.0
        %613 = vmatpush.msra.mxu0 0.0
        %614 = vmatpush.msra.mxu0 0.0
        %615 = vmatpush.msra.mxu0 0.0
        %616 = vmatpush.msra.mxu0 0.0
        %617 = vmatpush.msra.mxu0 0.0
        %618 = vmatpush.msra.mxu0 0.0
        %619 = vmatpush.msra.mxu0 0.0
        %620 = vmatpush.msra.mxu0 0.0
        %621 = vmatpush.msra.mxu0 %v446
        %622 = vmatmul.f32.gmra.mxu0 %v584
        %v623 = vpop.f32.mrf.mxu0
        %v624 = vadd.f32 0.0, %v623
        %625 = vdwg.mxu0
        %626 = vst [vmem:[%s343 + $0x20] sm:$0xff] %v604
        %627 = vst [vmem:[%s343 + $0x28] sm:$0xff] %v624
        %v628 = vmax.f32 %v604, %v624
        %629 = vmax.xlane.f32.xlu0 %v628
        %v630 = vpop.xlane.xlu0 %629
        %v631 = vmax.f32 %v581, %v630
        %632 = vrot.lane.b32.xlu0 %v481, 104
        %v633 = vpop.permute.xlu0 %632
        %v634 = vsel %vm483, %v633, 0
        %636 = vmatpush.msra.mxu0 0.0
        %637 = vmatpush.msra.mxu0 0.0
        %638 = vmatpush.msra.mxu0 0.0
        %639 = vmatpush.msra.mxu0 0.0
        %640 = vmatpush.msra.mxu0 0.0
        %641 = vmatpush.msra.mxu0 0.0
        %642 = vmatpush.msra.mxu0 0.0
        %643 = vmatpush.msra.mxu0 0.0
        %644 = vmatpush.msra.mxu0 0.0
        %645 = vmatpush.msra.mxu0 0.0
        %646 = vmatpush.msra.mxu0 0.0
        %647 = vmatpush.msra.mxu0 0.0
        %648 = vmatpush.msra.mxu0 0.0
        %649 = vmatpush.msra.mxu0 0.0
        %650 = vmatpush.msra.mxu0 0.0
        %651 = vmatpush.msra.mxu0 %v420
        %652 = vmatmul.f32.gmra.mxu0 %v634
        %v653 = vpop.f32.mrf.mxu0
        %v654 = vadd.f32 0.0, %v653
        %655 = vdwg.mxu0
        %656 = vmatpush.msra.mxu0 0.0
        %657 = vmatpush.msra.mxu0 0.0
        %658 = vmatpush.msra.mxu0 0.0
        %659 = vmatpush.msra.mxu0 0.0
        %660 = vmatpush.msra.mxu0 0.0
        %661 = vmatpush.msra.mxu0 0.0
        %662 = vmatpush.msra.mxu0 0.0
        %663 = vmatpush.msra.mxu0 0.0
        %664 = vmatpush.msra.mxu0 0.0
        %665 = vmatpush.msra.mxu0 0.0
        %666 = vmatpush.msra.mxu0 0.0
        %667 = vmatpush.msra.mxu0 0.0
        %668 = vmatpush.msra.mxu0 0.0
        %669 = vmatpush.msra.mxu0 0.0
        %670 = vmatpush.msra.mxu0 0.0
        %671 = vmatpush.msra.mxu0 %v449
        %672 = vmatmul.f32.gmra.mxu0 %v634
        %v673 = vpop.f32.mrf.mxu0
        %v674 = vadd.f32 0.0, %v673
        %675 = vdwg.mxu0
        %676 = vst [vmem:[%s343 + $0x30] sm:$0xff] %v654
        %677 = vst [vmem:[%s343 + $0x38] sm:$0xff] %v674
        %v678 = vmax.f32 %v654, %v674
        %679 = vmax.xlane.f32.xlu0 %v678
        %v680 = vpop.xlane.xlu0 %679
        %v681 = vmax.f32 %v631, %v680
        %v682 = vld [vmem:[%s343] sm:$0xff]
        %v683 = vld [vmem:[%s343 + $0x8] sm:$0xff]
        %v684 = vld [vmem:[%s343 + $0x10] sm:$0xff]
        %v685 = vld [vmem:[%s343 + $0x18] sm:$0xff]
        %v686 = vsub.f32 %v682, %v681
        %v687 = vsub.f32 %v683, %v681
        %v688 = vsub.f32 %v684, %v681
        %v689 = vsub.f32 %v685, %v681
        %v690 = vmul.f32 %v686, 1.442695
        %v691 = vpow.pop %v690
        %v692 = vmul.f32 %v687, 1.442695
        %v693 = vpow.pop %v692
        %v694 = vmul.f32 %v688, 1.442695
        %v695 = vpow.pop %v694
        %v696 = vmul.f32 %v689, 1.442695
        %v697 = vpow.pop %v696
        %698 = vst [vmem:[%s343] sm:$0xff] %v691
        %699 = vst [vmem:[%s343 + $0x8] sm:$0xff] %v693
        %700 = vst [vmem:[%s343 + $0x10] sm:$0xff] %v695
        %701 = vst [vmem:[%s343 + $0x18] sm:$0xff] %v697
        %v702 = vadd.f32 %v691, %v693
        %v703 = vadd.f32 %v702, %v695
        %v704 = vadd.f32 %v703, %v697
        %705 = vadd.xlane.f32.xlu0 %v704
        %v706 = vpop.xlane.xlu0 %705
        %v707 = vadd.f32 %v706, 0.0
        %v708 = vld [vmem:[%s343 + $0x20] sm:$0xff]
        %v709 = vld [vmem:[%s343 + $0x28] sm:$0xff]
        %v710 = vld [vmem:[%s343 + $0x30] sm:$0xff]
        %v711 = vld [vmem:[%s343 + $0x38] sm:$0xff]
        %v712 = vsub.f32 %v708, %v681
        %v713 = vsub.f32 %v709, %v681
        %v714 = vsub.f32 %v710, %v681
        %v715 = vsub.f32 %v711, %v681
        %v716 = vmul.f32 %v712, 1.442695
        %v717 = vpow.pop %v716
        %v718 = vmul.f32 %v713, 1.442695
        %v719 = vpow.pop %v718
        %v720 = vmul.f32 %v714, 1.442695
        %v721 = vpow.pop %v720
        %v722 = vmul.f32 %v715, 1.442695
        %v723 = vpow.pop %v722
        %724 = vst [vmem:[%s343 + $0x20] sm:$0xff] %v717
        %725 = vst [vmem:[%s343 + $0x28] sm:$0xff] %v719
        %726 = vst [vmem:[%s343 + $0x30] sm:$0xff] %v721
        %727 = vst [vmem:[%s343 + $0x38] sm:$0xff] %v723
        %v728 = vadd.f32 %v717, %v719
        %v729 = vadd.f32 %v728, %v721
        %v730 = vadd.f32 %v729, %v723
        %731 = vadd.xlane.f32.xlu0 %v730
        %v732 = vpop.xlane.xlu0 %731
        %v733 = vadd.f32 %v707, %v732
        %v734 = vrcp.pop %v733
        %v735 = vmul.f32 %v733, %v734
        %v736 = vsub.f32 1.0, %v735
        %v737 = vmul.f32 %v734, %v736
        %v738 = vadd.f32 %v734, %v737
        %vm739 = vweird.f32 %v733
        %vm740 = vweird.f32 %v734
        %vm741 = vmor %vm739, %vm740
        %v742 = vsel %vm741, %v734, %v738
        %v743 = vand.u32 2147483647, %v733
        %vm744 = vcmp.eq.f32.partialorder %v743, 8.507059e+37
        %v745 = vand.u32 %v733, 2147483648
        %v746 = vor.u32 1.1754944e-38, %v745
        %v747 = vsel %vm744, %v746, %v742
        %v748 = vld [vmem:[%s343] sm:$0xff]
        %v749 = vld [vmem:[%s343 + $0x8] sm:$0xff]
        %v750 = vld [vmem:[%s343 + $0x10] sm:$0xff]
        %v751 = vld [vmem:[%s343 + $0x18] sm:$0xff]
        %v752 = vmul.f32 %v748, %v747
        %v753 = vmul.f32 %v749, %v747
        %v754 = vmul.f32 %v750, %v747
        %v755 = vmul.f32 %v751, %v747
        %756 = vst [vmem:[%s343] sm:$0xff] %v752
        %757 = vst [vmem:[%s343 + $0x8] sm:$0xff] %v753
        %758 = vst [vmem:[%s343 + $0x10] sm:$0xff] %v754
        %759 = vst [vmem:[%s343 + $0x18] sm:$0xff] %v755
        %v760 = vld [vmem:[%s343 + $0x20] sm:$0xff]
        %v761 = vld [vmem:[%s343 + $0x28] sm:$0xff]
        %v762 = vld [vmem:[%s343 + $0x30] sm:$0xff]
        %v763 = vld [vmem:[%s343 + $0x38] sm:$0xff]
        %v764 = vmul.f32 %v760, %v747
        %v765 = vmul.f32 %v761, %v747
        %v766 = vmul.f32 %v762, %v747
        %v767 = vmul.f32 %v763, %v747
        %768 = vst [vmem:[%s343 + $0x20] sm:$0xff] %v764
        %769 = vst [vmem:[%s343 + $0x28] sm:$0xff] %v765
        %770 = vst [vmem:[%s343 + $0x30] sm:$0xff] %v766
        %771 = vst [vmem:[%s343 + $0x38] sm:$0xff] %v767
        %s772 = sand.u32 %s186, 1
        %s773 = scalar_lea.sflag [#allocation4], %s772
        %s774 = sand.u32 %s186, 1
        %s775 = smul.addr %s774, 64
        %s776 = scalar_lea.vmem [#allocation8], %s775
        // Predicated region
        $region57: #{tpu_custom_call.1} parent=43 // pred_check
          %p777 = pneg %p196
        $region58: #{tpu_custom_call.1} parent=43 // pred_check_branch
          %779 = sbr.rel (%p777) target = $region60
        $region59: #{tpu_custom_call.1} parent=43 // pred_region
          %781 = vsyncadd %s773, 0
          %s782 = smul.addr %s31, 8
          %s783 = smul.addr %s30, 8
          %s784 = sadd.s32 %s782, %s783
          %s785 = smul.addr %s784, 8
          %s786 = scalar_lea.hbm %s6, %s785
          %s788 = sshll.u32 %s776, 4
          %s789 = int_to_ptr.vmem [resolvable:$true] %s788
          %s790 = sshll.u32 %s786, 4
          %s791 = int_to_ptr.hbm [resolvable:$true] %s790
          %793 = dma.vmem_to_hbm [thread:$0]  %s789, 1024, %s791, %s773
        $region60: #{tpu_custom_call.1} parent=43 // pred_fallthru
          _
      $region44: #{tpu_custom_call.1} parent=5 // pred_fallthru
        _
      %p794 = scmp.le.s32.totalorder 2, %s21
      // Predicated region
      $region61: #{tpu_custom_call.1} parent=5 // pred_check
        %p795 = pneg %p794
      $region62: #{tpu_custom_call.1} parent=5 // pred_check_branch
        %797 = sbr.rel (%p795) target = $region64
      $region63: #{tpu_custom_call.1} parent=5 // pred_region
        %s798 = ssub.s32 %s21, 2
        // Predicated region
        $region65: #{tpu_custom_call.1} parent=63 // pred_check
          %p799 = pneg %p202
        $region66: #{tpu_custom_call.1} parent=63 // pred_check_branch
          %801 = sbr.rel (%p799) target = $region68
        $region67: #{tpu_custom_call.1} parent=63 // pred_region
          %s802 = sand.u32 %s187, 1
          %s803 = scalar_lea.sflag [#allocation4], %s802
          %s804 = sand.u32 %s187, 1
          %s805 = smul.addr %s804, 64
          %s806 = scalar_lea.vmem [#allocation8], %s805
          %808 = dma.done %s803, 1024
        $region68: #{tpu_custom_call.1} parent=63 // pred_fallthru
          _
      $region64: #{tpu_custom_call.1} parent=5 // pred_fallthru
        _
    $region6: #{tpu_custom_call.1} parent=1 // loop_footer
      %s25 = sadd.s32 1, %s21
    $region7: #{tpu_custom_call.1} parent=1 // loop_footer_branch
      %20 = sbr.rel target = $region3
    $region8: #{tpu_custom_call.1} parent=1 // loop_exit
      _
    %809 = vsyncpa [#allocation3], 1
    %s810 = scalar_lea.sflag [#allocation3], 1
    %811 = vsyncpa %s810, 1
    %812 = vsyncpa [#allocation6], 1
    %s813 = scalar_lea.sflag [#allocation6], 1
    %814 = vsyncpa %s813, 1
    %815 = vsyncpa [#allocation4], 1
    %s816 = scalar_lea.sflag [#allocation4], 1
    %817 = vsyncpa %s816, 1

</llo_original>
